<compile_context>
chip_gen: v7x
topology: tpu7x:2x2x1
jax: 0.10.0
libtpu: 0.0.40
codegen_flags: <defaults>
</compile_context>

<pallas_src>
import jax
import jax.numpy as jnp
from jax.experimental import pallas as pl
from jax.experimental.pallas import tpu as pltpu

LANE = 128       # lane width
ROW_ALIGN = 16   # batch-row alignment; safe sublane tile for both f32 and bf16

N_HID1 = 512
N_HID2 = 128


def _round_up(x, m):
    return (x + m - 1) // m * m


def _sigmoid(z):
    # exp on the EUP, approx reciprocal also on the EUP -> no VPU divide.
    # exp(-z) -> inf for very negative z gives recip(inf) = 0, matching sigmoid.
    return pl.reciprocal(1.0 + jnp.exp(-z), approx=True)


def _mlp_kernel(x_ref, w1_ref, b1_ref, w2_ref, b2_ref, w3_ref, b3_ref, o_ref):
    """One batch tile of sigmoid(x@W1+b1) -> sigmoid(.@W2+b2) -> .@W3+b3."""
    mm_dtype = w1_ref.dtype          # bf16 by default; f32 if prepared that way
    x = x_ref[...]                   # wrapper already streams x in mm_dtype

    # fc1 + sigmoid (MXU matmul, f32 accumulate; bias/sigmoid in f32)
    h1 = jnp.dot(x, w1_ref[...], preferred_element_type=jnp.float32)
    h1 = _sigmoid(h1 + b1_ref[...])

    # fc2 + sigmoid
    h2 = jnp.dot(h1.astype(mm_dtype), w2_ref[...], preferred_element_type=jnp.float32)
    h2 = _sigmoid(h2 + b2_ref[...])

    # fc3 (out dim padded to a multiple of 128 -> lane-dense, unmasked stores)
    h3 = jnp.dot(h2.astype(mm_dtype), w3_ref[...], preferred_element_type=jnp.float32)
    o_ref[...] = (h3 + b3_ref[...]).astype(o_ref.dtype)


def init_params(key, img_h, img_w, n_classes):
    """nn.Linear-style U(-1/sqrt(fan_in), +1/sqrt(fan_in)) init, stored as
    [in, out] so the forward path never transposes weights."""
    flattened = img_h * img_w
    dims = [(flattened, N_HID1), (N_HID1, N_HID2), (N_HID2, n_classes)]
    params = {}
    keys = jax.random.split(key, 6)
    for i, (fan_in, fan_out) in enumerate(dims):
        bound = 1.0 / jnp.sqrt(float(fan_in))
        params[f"w{i + 1}"] = jax.random.uniform(
            keys[2 * i], (fan_in, fan_out), jnp.float32, -bound, bound)
        params[f"b{i + 1}"] = jax.random.uniform(
            keys[2 * i + 1], (fan_out,), jnp.float32, -bound, bound)
    return params


def prepare_params(params, img_h, img_w, n_classes, matmul_dtype=jnp.bfloat16):
    """One-time layout prep (NOT on the per-call path):
      * weights kept [in, out], cast to matmul_dtype (bf16 default -> MXU peak,
        half the resident-weight DMA; pass jnp.float32 for a tight check)
      * fc1 in-dim (flattened) zero-padded to a multiple of 128 (lane-dense K)
      * fc3 out-dim zero-padded to a multiple of 128 (lane-dense output)
      * biases as (1, N) f32 rows (elementwise stays f32)."""
    flattened = img_h * img_w
    k_pad = _round_up(max(flattened, LANE), LANE)
    n_out_pad = _round_up(max(n_classes, LANE), LANE)
    prepared = {
        "w1": jnp.pad(params["w1"], ((0, k_pad - flattened), (0, 0))).astype(matmul_dtype),
        "w2": params["w2"].astype(matmul_dtype),
        "w3": jnp.pad(params["w3"], ((0, 0), (0, n_out_pad - n_classes))).astype(matmul_dtype),
        "b1": params["b1"].reshape(1, -1).astype(jnp.float32),
        "b2": params["b2"].reshape(1, -1).astype(jnp.float32),
        "b3": jnp.pad(params["b3"], (0, n_out_pad - n_classes)).reshape(1, -1).astype(jnp.float32),
    }
    return prepared


def sigmoid_model3_forward(x, prepared, img_h, img_w, n_classes, *, block_b=512):
    flattened = img_h * img_w

    w1, b1 = prepared["w1"], prepared["b1"]
    w2, b2 = prepared["w2"], prepared["b2"]
    w3, b3 = prepared["w3"], prepared["b3"]
    mm_dtype = w1.dtype
    k_pad = w1.shape[0]
    n_out_pad = w3.shape[1]
    w_bytes = w1.dtype.itemsize

    # == torch .view(-1, flattened); stream activations in the matmul dtype
    # (bf16 by default -> half the input HBM bytes per row).
    x2d = x.reshape(-1, flattened).astype(mm_dtype)
    B = x2d.shape[0]
    if k_pad != flattened:
        x2d = jnp.pad(x2d, ((0, 0), (0, k_pad - flattened)))

    # Batch tiling: big tiles (amortize ~0.35us/grid-step overhead), but if the
    # grid would collapse to a single step while B has >= 2 row-groups, split it
    # so the "parallel" axis can shard across both TensorCores on v7x.
    tm = min(block_b, _round_up(B, ROW_ALIGN))
    if B > ROW_ALIGN and pl.cdiv(_round_up(B, ROW_ALIGN), tm) < 2:
        tm = _round_up(pl.cdiv(B, 2), ROW_ALIGN)
    b_pad = _round_up(B, tm)
    if b_pad != B:
        x2d = jnp.pad(x2d, ((0, b_pad - B), (0, 0)))
    grid = (b_pad // tm,)

    # Resident (grid-invariant) weight/bias blocks: full-array shapes.
    full = lambda a: pl.BlockSpec(a.shape, lambda i: (0,) * a.ndim)

    # Weight bytes counted once: their blocks are grid-invariant (stay in VMEM).
    cost = pl.CostEstimate(
        flops=2 * b_pad * (k_pad * N_HID1 + N_HID1 * N_HID2 + N_HID2 * n_out_pad),
        transcendentals=b_pad * (N_HID1 + N_HID2),
        bytes_accessed=(x2d.dtype.itemsize * b_pad * k_pad
                        + 4 * b_pad * n_out_pad
                        + w_bytes * (k_pad * N_HID1 + N_HID1 * N_HID2 + N_HID2 * n_out_pad)
                        + 4 * (N_HID1 + N_HID2 + n_out_pad)),
    )

    out = pl.pallas_call(
        _mlp_kernel,
        out_shape=jax.ShapeDtypeStruct((b_pad, n_out_pad), jnp.float32),
        grid_spec=pl.GridSpec(
            grid=grid,
            in_specs=[
                pl.BlockSpec((tm, k_pad), lambda i: (i, 0)),   # activations: tiled over B
                full(w1), full(b1),
                full(w2), full(b2),
                full(w3), full(b3),
            ],
            out_specs=pl.BlockSpec((tm, n_out_pad), lambda i: (i, 0)),
        ),
        compiler_params=pltpu.CompilerParams(dimension_semantics=("parallel",)),
        cost_estimate=cost,
    )(x2d, w1, b1, w2, b2, w3, b3)

    return out[:B, :n_classes]


if __name__ == "__main__":
    img_h, img_w, n_classes = 16, 16, 10
    batch = 2

    key = jax.random.PRNGKey(0)
    pkey, xkey = jax.random.split(key)
    params = init_params(pkey, img_h, img_w, n_classes)

    # bf16 matmul operands by default (MXU-native on v5e/v6e/v7x, half the
    # weight/activation DMA).  Use matmul_dtype=jnp.float32 for a 1e-5 check.
    prepared = prepare_params(params, img_h, img_w, n_classes,
                              matmul_dtype=jnp.bfloat16)

    # NCHW-style input [B, 1, H, W]
    x = jax.random.normal(xkey, (batch, 1, img_h, img_w), dtype=jnp.float32)

    out = sigmoid_model3_forward(x, prepared, img_h, img_w, n_classes)
    out = jax.block_until_ready(out)

    # Pure-JAX f32 reference (same math as the PyTorch module; [in, out] weights).
    x2d = x.reshape(-1, img_h * img_w)
    h1 = jax.nn.sigmoid(x2d @ params["w1"] + params["b1"])
    h2 = jax.nn.sigmoid(h1 @ params["w2"] + params["b2"])
    ref = h2 @ params["w3"] + params["b3"]

    assert out.shape == (batch, n_classes)
    # Tolerance relaxed for bf16 matmul operands (per perf review); observed
    # error is O(1e-3) against the f32 reference at these shapes.
    assert jnp.allclose(out, ref, atol=2e-2, rtol=2e-2), float(jnp.abs(out - ref).max())

    print("KERNEL_OK")
</pallas_src>

<mosaic_0001>
module attributes {stable_mosaic.version = 11 : i64} {
  func.func @_mlp_kernel(%arg0: i32, %arg1: memref<16x256xbf16, #tpu.memory_space<vmem>>, %arg2: memref<256x512xbf16, #tpu.memory_space<vmem>>, %arg3: memref<1x512xf32, #tpu.memory_space<vmem>>, %arg4: memref<512x128xbf16, #tpu.memory_space<vmem>>, %arg5: memref<1x128xf32, #tpu.memory_space<vmem>>, %arg6: memref<128x128xbf16, #tpu.memory_space<vmem>>, %arg7: memref<1x128xf32, #tpu.memory_space<vmem>>, %arg8: memref<16x128xf32, #tpu.memory_space<vmem>>) attributes {dimension_semantics = [#tpu.dimension_semantics<parallel>], iteration_bounds = array<i64: 1>, scalar_prefetch = 0 : i64, scratch_operands = 0 : i64, tpu.core_type = #tpu.core_type<tc>, window_params = [{transform_indices = @transform_0, window_bounds = array<i64: 16, 256>}, {pipeline_mode = #tpu.pipeline_mode<synchronous>, transform_indices = @transform_1, window_bounds = array<i64: 256, 512>}, {pipeline_mode = #tpu.pipeline_mode<synchronous>, transform_indices = @transform_2, window_bounds = array<i64: 1, 512>}, {pipeline_mode = #tpu.pipeline_mode<synchronous>, transform_indices = @transform_3, window_bounds = array<i64: 512, 128>}, {pipeline_mode = #tpu.pipeline_mode<synchronous>, transform_indices = @transform_4, window_bounds = array<i64: 1, 128>}, {pipeline_mode = #tpu.pipeline_mode<synchronous>, transform_indices = @transform_5, window_bounds = array<i64: 128, 128>}, {pipeline_mode = #tpu.pipeline_mode<synchronous>, transform_indices = @transform_6, window_bounds = array<i64: 1, 128>}, {transform_indices = @transform_7, window_bounds = array<i64: 16, 128>}]} {
    %c0 = arith.constant 0 : index
    %c0_0 = arith.constant 0 : index
    %0 = vector.load %arg1[%c0, %c0_0] : memref<16x256xbf16, #tpu.memory_space<vmem>>, vector<16x256xbf16>
    %c0_1 = arith.constant 0 : index
    %c0_2 = arith.constant 0 : index
    %1 = vector.load %arg2[%c0_1, %c0_2] : memref<256x512xbf16, #tpu.memory_space<vmem>>, vector<256x512xbf16>
    %cst = arith.constant dense<0.000000e+00> : vector<16x512xf32>
    %2 = tpu.matmul %0, %1, %cst {dimension_numbers = #tpu.dot_dimension_numbers<[1], [0], [0], [1], [0, 0, 1, 1], [], []>} : vector<16x256xbf16>, vector<256x512xbf16>, vector<16x512xf32> -> vector<16x512xf32>
    %c0_3 = arith.constant 0 : index
    %c0_4 = arith.constant 0 : index
    %3 = vector.load %arg3[%c0_3, %c0_4] : memref<1x512xf32, #tpu.memory_space<vmem>>, vector<1x512xf32>
    %4 = vector.broadcast %3 : vector<1x512xf32> to vector<16x512xf32>
    %5 = arith.addf %2, %4 : vector<16x512xf32>
    %cst_5 = arith.constant 0.000000e+00 : f32
    %6 = vector.broadcast %cst_5 : f32 to vector<16x512xf32>
    %7 = arith.subf %6, %5 : vector<16x512xf32>
    %8 = math.exp %7 : vector<16x512xf32>
    %cst_6 = arith.constant 1.000000e+00 : f32
    %9 = vector.broadcast %cst_6 : f32 to vector<16x512xf32>
    %10 = arith.addf %9, %8 : vector<16x512xf32>
    %11 = tpu.reciprocal %10 {approx = true} : vector<16x512xf32> -> vector<16x512xf32>
    %12 = arith.truncf %11 : vector<16x512xf32> to vector<16x512xbf16>
    %c0_7 = arith.constant 0 : index
    %c0_8 = arith.constant 0 : index
    %13 = vector.load %arg4[%c0_7, %c0_8] : memref<512x128xbf16, #tpu.memory_space<vmem>>, vector<512x128xbf16>
    %cst_9 = arith.constant dense<0.000000e+00> : vector<16x128xf32>
    %14 = tpu.matmul %12, %13, %cst_9 {dimension_numbers = #tpu.dot_dimension_numbers<[1], [0], [0], [1], [0, 0, 1, 1], [], []>} : vector<16x512xbf16>, vector<512x128xbf16>, vector<16x128xf32> -> vector<16x128xf32>
    %c0_10 = arith.constant 0 : index
    %c0_11 = arith.constant 0 : index
    %15 = vector.load %arg5[%c0_10, %c0_11] : memref<1x128xf32, #tpu.memory_space<vmem>>, vector<1x128xf32>
    %16 = vector.broadcast %15 : vector<1x128xf32> to vector<16x128xf32>
    %17 = arith.addf %14, %16 : vector<16x128xf32>
    %cst_12 = arith.constant 0.000000e+00 : f32
    %18 = vector.broadcast %cst_12 : f32 to vector<16x128xf32>
    %19 = arith.subf %18, %17 : vector<16x128xf32>
    %20 = math.exp %19 : vector<16x128xf32>
    %cst_13 = arith.constant 1.000000e+00 : f32
    %21 = vector.broadcast %cst_13 : f32 to vector<16x128xf32>
    %22 = arith.addf %21, %20 : vector<16x128xf32>
    %23 = tpu.reciprocal %22 {approx = true} : vector<16x128xf32> -> vector<16x128xf32>
    %24 = arith.truncf %23 : vector<16x128xf32> to vector<16x128xbf16>
    %c0_14 = arith.constant 0 : index
    %c0_15 = arith.constant 0 : index
    %25 = vector.load %arg6[%c0_14, %c0_15] : memref<128x128xbf16, #tpu.memory_space<vmem>>, vector<128x128xbf16>
    %cst_16 = arith.constant dense<0.000000e+00> : vector<16x128xf32>
    %26 = tpu.matmul %24, %25, %cst_16 {dimension_numbers = #tpu.dot_dimension_numbers<[1], [0], [0], [1], [0, 0, 1, 1], [], []>} : vector<16x128xbf16>, vector<128x128xbf16>, vector<16x128xf32> -> vector<16x128xf32>
    %c0_17 = arith.constant 0 : index
    %c0_18 = arith.constant 0 : index
    %27 = vector.load %arg7[%c0_17, %c0_18] : memref<1x128xf32, #tpu.memory_space<vmem>>, vector<1x128xf32>
    %28 = vector.broadcast %27 : vector<1x128xf32> to vector<16x128xf32>
    %29 = arith.addf %26, %28 : vector<16x128xf32>
    %c0_19 = arith.constant 0 : index
    %c0_20 = arith.constant 0 : index
    %30 = vector.load %arg8[%c0_19, %c0_20] : memref<16x128xf32, #tpu.memory_space<vmem>>, vector<16x128xf32>
    tpu.vector_store %arg8[%c0_19, %c0_20], %29 {strides = array<i32>} : memref<16x128xf32, #tpu.memory_space<vmem>>, vector<16x128xf32>,
    return
  }
  func.func @transform_0(%arg0: i32) -> (i32, i32) {
    %c0_i32 = arith.constant 0 : i32
    %c0_i32_0 = arith.constant 0 : i32
    return %arg0, %c0_i32 : i32, i32
  }
  func.func @transform_1(%arg0: i32) -> (i32, i32) {
    %c0_i32 = arith.constant 0 : i32
    %c0_i32_0 = arith.constant 0 : i32
    %c0_i32_1 = arith.constant 0 : i32
    return %c0_i32, %c0_i32_0 : i32, i32
  }
  func.func @transform_2(%arg0: i32) -> (i32, i32) {
    %c0_i32 = arith.constant 0 : i32
    %c0_i32_0 = arith.constant 0 : i32
    %c0_i32_1 = arith.constant 0 : i32
    return %c0_i32, %c0_i32_0 : i32, i32
  }
  func.func @transform_3(%arg0: i32) -> (i32, i32) {
    %c0_i32 = arith.constant 0 : i32
    %c0_i32_0 = arith.constant 0 : i32
    %c0_i32_1 = arith.constant 0 : i32
    return %c0_i32, %c0_i32_0 : i32, i32
  }
  func.func @transform_4(%arg0: i32) -> (i32, i32) {
    %c0_i32 = arith.constant 0 : i32
    %c0_i32_0 = arith.constant 0 : i32
    %c0_i32_1 = arith.constant 0 : i32
    return %c0_i32, %c0_i32_0 : i32, i32
  }
  func.func @transform_5(%arg0: i32) -> (i32, i32) {
    %c0_i32 = arith.constant 0 : i32
    %c0_i32_0 = arith.constant 0 : i32
    %c0_i32_1 = arith.constant 0 : i32
    return %c0_i32, %c0_i32_0 : i32, i32
  }
  func.func @transform_6(%arg0: i32) -> (i32, i32) {
    %c0_i32 = arith.constant 0 : i32
    %c0_i32_0 = arith.constant 0 : i32
    %c0_i32_1 = arith.constant 0 : i32
    return %c0_i32, %c0_i32_0 : i32, i32
  }
  func.func @transform_7(%arg0: i32) -> (i32, i32) {
    %c0_i32 = arith.constant 0 : i32
    %c0_i32_0 = arith.constant 0 : i32
    return %arg0, %c0_i32 : i32, i32
  }
}

</mosaic_0001>

<llo_original>
// kernel: tpu_custom_call.1
$region0: #{tpu_custom_call.1}
  #allocation0 [shape = 'u32[]', space=smem, size = 0x4, offset = 0x4, fixed_abs, tag = 'smem constant byte address 0x4 - core index']
  #allocation1 [shape = 'u32[144,128]{1,0:T(1,128)}', space=vmem, size = 0x12000, scoped, tag = 'internal scratch']
  %s0 = inlined_call_operand.hbm [shape: bf16[16,256], index: 0, kind: input, shape index: {}]
  %s1 = inlined_call_operand.hbm [shape: bf16[256,512], index: 1, kind: input, shape index: {}]
  %s2 = inlined_call_operand.vmem [shape: f32[1,512], index: 2, kind: input, shape index: {}]
  %s3 = inlined_call_operand.hbm [shape: bf16[512,128], index: 3, kind: input, shape index: {}]
  %s4 = inlined_call_operand.vmem [shape: f32[1,128], index: 4, kind: input, shape index: {}]
  %s5 = inlined_call_operand.hbm [shape: bf16[128,128], index: 5, kind: input, shape index: {}]
  %s6 = inlined_call_operand.vmem [shape: f32[1,128], index: 6, kind: input, shape index: {}]
  %s7 = inlined_call_operand.hbm [shape: f32[16,128], index: 7, kind: output, shape index: {}]
  %s8 = sld [smem:[#allocation0]]
  $region54: #{tpu_custom_call.1} parent=0
    _
  %s10 = ssub.s32 1, %s8
  %s11 = scalar_select 0, %s10, %s8
  $region1: #{tpu_custom_call.1} parent=0
    #allocation2 [shape = 'u8[8192]{0}', space=vmem, size = 0x2000, scoped, tag = 'input window, operand 0, single buffered']
    #allocation3 [shape = 's32[1]{0}', space=sflag, size = 0x4, scoped, tag = 'scoped memory for tpu_custom_call.1']
    #allocation4 [shape = 's32[1]{0}', space=sflag, size = 0x4, scoped, tag = 'scoped memory for tpu_custom_call.1']
    #allocation5 [shape = 'u8[262144]{0}', space=vmem, size = 0x40000, scoped, tag = 'input window, operand 1, single buffered']
    #allocation6 [shape = 's32[1]{0}', space=sflag, size = 0x4, scoped, tag = 'scoped memory for tpu_custom_call.1']
    #allocation7 [shape = 'u8[131072]{0}', space=vmem, size = 0x20000, scoped, tag = 'input window, operand 3, single buffered']
    #allocation8 [shape = 'u8[32768]{0}', space=vmem, size = 0x8000, scoped, tag = 'input window, operand 5, single buffered']
    #allocation9 [shape = 's32[1]{0}', space=sflag, size = 0x4, scoped, tag = 'scoped memory for tpu_custom_call.1']
    #allocation10 [shape = 'u8[8192]{0}', space=vmem, size = 0x2000, scoped, tag = 'output window, operand 0, single buffered']
    %12 = vsyncpa [#allocation3], 0
    %13 = vsyncpa [#allocation6], 0
    %14 = vsyncpa [#allocation9], 0
    %15 = vsyncpa [#allocation4], 0
    // Predicated region
    $region2: #{tpu_custom_call.1} parent=1 // pred_check
      _
    $region3: #{tpu_custom_call.1} parent=1 // pred_check_branch
      %17 = sbr.rel (0) target = $region5
    $region4: #{tpu_custom_call.1} parent=1 // pred_region
      %s19 = ssub.s32 256, 256
      %20 = vsyncadd [#allocation3], %s19
      %s21 = sshll.u32 [#allocation2], 4
      %s22 = int_to_ptr.vmem [resolvable:$true] %s21
      %27 = dma.hbm_to_vmem [thread:$0]  %s0, 256, %s22, [#allocation3], 128, 128, 8
    $region5: #{tpu_custom_call.1} parent=1 // pred_fallthru
      _
    // Predicated region
    $region6: #{tpu_custom_call.1} parent=1 // pred_check
      _
    $region7: #{tpu_custom_call.1} parent=1 // pred_check_branch
      %29 = sbr.rel (0) target = $region9
    $region8: #{tpu_custom_call.1} parent=1 // pred_region
      %s31 = ssub.s32 8192, 8192
      %32 = vsyncadd [#allocation6], %s31
      %s33 = sshll.u32 [#allocation5], 4
      %s34 = int_to_ptr.vmem [resolvable:$true] %s33
      %39 = dma.hbm_to_vmem [thread:$0]  %s1, 8192, %s34, [#allocation6], 256, 256, 16
    $region9: #{tpu_custom_call.1} parent=1 // pred_fallthru
      _
    // Predicated region
    $region10: #{tpu_custom_call.1} parent=1 // pred_check
      _
    $region11: #{tpu_custom_call.1} parent=1 // pred_check_branch
      %41 = sbr.rel (0) target = $region13
    $region12: #{tpu_custom_call.1} parent=1 // pred_region
      _
    $region13: #{tpu_custom_call.1} parent=1 // pred_fallthru
      _
    // Predicated region
    $region14: #{tpu_custom_call.1} parent=1 // pred_check
      _
    $region15: #{tpu_custom_call.1} parent=1 // pred_check_branch
      %43 = sbr.rel (0) target = $region17
    $region16: #{tpu_custom_call.1} parent=1 // pred_region
      %s45 = ssub.s32 4096, 4096
      %46 = vsyncadd [#allocation6], %s45
      %s47 = sshll.u32 [#allocation7], 4
      %s48 = int_to_ptr.vmem [resolvable:$true] %s47
      %53 = dma.hbm_to_vmem [thread:$0]  %s3, 4096, %s48, [#allocation6], 64, 64, 4
    $region17: #{tpu_custom_call.1} parent=1 // pred_fallthru
      _
    // Predicated region
    $region18: #{tpu_custom_call.1} parent=1 // pred_check
      _
    $region19: #{tpu_custom_call.1} parent=1 // pred_check_branch
      %55 = sbr.rel (0) target = $region21
    $region20: #{tpu_custom_call.1} parent=1 // pred_region
      _
    $region21: #{tpu_custom_call.1} parent=1 // pred_fallthru
      _
    // Predicated region
    $region22: #{tpu_custom_call.1} parent=1 // pred_check
      _
    $region23: #{tpu_custom_call.1} parent=1 // pred_check_branch
      %57 = sbr.rel (0) target = $region25
    $region24: #{tpu_custom_call.1} parent=1 // pred_region
      %s59 = ssub.s32 1024, 1024
      %60 = vsyncadd [#allocation9], %s59
      %s61 = sshll.u32 [#allocation8], 4
      %s62 = int_to_ptr.vmem [resolvable:$true] %s61
      %67 = dma.hbm_to_vmem [thread:$0]  %s5, 1024, %s62, [#allocation9], 64, 64, 4
    $region25: #{tpu_custom_call.1} parent=1 // pred_fallthru
      _
    // Predicated region
    $region26: #{tpu_custom_call.1} parent=1 // pred_check
      _
    $region27: #{tpu_custom_call.1} parent=1 // pred_check_branch
      %69 = sbr.rel (0) target = $region29
    $region28: #{tpu_custom_call.1} parent=1 // pred_region
      _
    $region29: #{tpu_custom_call.1} parent=1 // pred_fallthru
      _
    // Predicated region
    $region30: #{tpu_custom_call.1} parent=1 // pred_check
      _
    $region31: #{tpu_custom_call.1} parent=1 // pred_check_branch
      %71 = sbr.rel (0) target = $region33
    $region32: #{tpu_custom_call.1} parent=1 // pred_region
      %72 = dma.done [#allocation3], 256
    $region33: #{tpu_custom_call.1} parent=1 // pred_fallthru
      _
    // Predicated region
    $region34: #{tpu_custom_call.1} parent=1 // pred_check
      _
    $region35: #{tpu_custom_call.1} parent=1 // pred_check_branch
      %74 = sbr.rel (0) target = $region37
    $region36: #{tpu_custom_call.1} parent=1 // pred_region
      %75 = dma.done [#allocation6], 8192
    $region37: #{tpu_custom_call.1} parent=1 // pred_fallthru
      _
    // Predicated region
    $region38: #{tpu_custom_call.1} parent=1 // pred_check
      _
    $region39: #{tpu_custom_call.1} parent=1 // pred_check_branch
      %77 = sbr.rel (0) target = $region41
    $region40: #{tpu_custom_call.1} parent=1 // pred_region
      %78 = dma.done [#allocation6], 4096
    $region41: #{tpu_custom_call.1} parent=1 // pred_fallthru
      _
    // Predicated region
    $region42: #{tpu_custom_call.1} parent=1 // pred_check
      _
    $region43: #{tpu_custom_call.1} parent=1 // pred_check_branch
      %80 = sbr.rel (0) target = $region45
    $region44: #{tpu_custom_call.1} parent=1 // pred_region
      %81 = dma.done [#allocation9], 1024
    $region45: #{tpu_custom_call.1} parent=1 // pred_fallthru
      _
    %v83 = vld [vmem:[#allocation2] sm:$0xff]
    %v84 = vld [vmem:[#allocation2 + $0x8] sm:$0xff]
    %v85 = vld [vmem:[#allocation5] sm:$0xff]
    %v86 = vld [vmem:[#allocation5 + $0x8] sm:$0xff]
    %v87 = vld [vmem:[#allocation5 + $0x10] sm:$0xff]
    %v88 = vld [vmem:[#allocation5 + $0x18] sm:$0xff]
    %v89 = vld [vmem:[#allocation5 + $0x20] sm:$0xff]
    %v90 = vld [vmem:[#allocation5 + $0x28] sm:$0xff]
    %v91 = vld [vmem:[#allocation5 + $0x30] sm:$0xff]
    %v92 = vld [vmem:[#allocation5 + $0x38] sm:$0xff]
    %v93 = vld [vmem:[#allocation5 + $0x40] sm:$0xff]
    %v94 = vld [vmem:[#allocation5 + $0x48] sm:$0xff]
    %v95 = vld [vmem:[#allocation5 + $0x50] sm:$0xff]
    %v96 = vld [vmem:[#allocation5 + $0x58] sm:$0xff]
    %v97 = vld [vmem:[#allocation5 + $0x60] sm:$0xff]
    %v98 = vld [vmem:[#allocation5 + $0x68] sm:$0xff]
    %v99 = vld [vmem:[#allocation5 + $0x70] sm:$0xff]
    %v100 = vld [vmem:[#allocation5 + $0x78] sm:$0xff]
    %v101 = vld [vmem:[#allocation5 + $0x80] sm:$0xff]
    %v102 = vld [vmem:[#allocation5 + $0x88] sm:$0xff]
    %v103 = vld [vmem:[#allocation5 + $0x90] sm:$0xff]
    %v104 = vld [vmem:[#allocation5 + $0x98] sm:$0xff]
    %v105 = vld [vmem:[#allocation5 + $0xa0] sm:$0xff]
    %v106 = vld [vmem:[#allocation5 + $0xa8] sm:$0xff]
    %v107 = vld [vmem:[#allocation5 + $0xb0] sm:$0xff]
    %v108 = vld [vmem:[#allocation5 + $0xb8] sm:$0xff]
    %v109 = vld [vmem:[#allocation5 + $0xc0] sm:$0xff]
    %v110 = vld [vmem:[#allocation5 + $0xc8] sm:$0xff]
    %v111 = vld [vmem:[#allocation5 + $0xd0] sm:$0xff]
    %v112 = vld [vmem:[#allocation5 + $0xd8] sm:$0xff]
    %v113 = vld [vmem:[#allocation5 + $0xe0] sm:$0xff]
    %v114 = vld [vmem:[#allocation5 + $0xe8] sm:$0xff]
    %v115 = vld [vmem:[#allocation5 + $0xf0] sm:$0xff]
    %v116 = vld [vmem:[#allocation5 + $0xf8] sm:$0xff]
    %v117 = vld [vmem:[#allocation5 + $0x100] sm:$0xff]
    %v118 = vld [vmem:[#allocation5 + $0x108] sm:$0xff]
    %v119 = vld [vmem:[#allocation5 + $0x110] sm:$0xff]
    %v120 = vld [vmem:[#allocation5 + $0x118] sm:$0xff]
    %v121 = vld [vmem:[#allocation5 + $0x120] sm:$0xff]
    %v122 = vld [vmem:[#allocation5 + $0x128] sm:$0xff]
    %v123 = vld [vmem:[#allocation5 + $0x130] sm:$0xff]
    %v124 = vld [vmem:[#allocation5 + $0x138] sm:$0xff]
    %v125 = vld [vmem:[#allocation5 + $0x140] sm:$0xff]
    %v126 = vld [vmem:[#allocation5 + $0x148] sm:$0xff]
    %v127 = vld [vmem:[#allocation5 + $0x150] sm:$0xff]
    %v128 = vld [vmem:[#allocation5 + $0x158] sm:$0xff]
    %v129 = vld [vmem:[#allocation5 + $0x160] sm:$0xff]
    %v130 = vld [vmem:[#allocation5 + $0x168] sm:$0xff]
    %v131 = vld [vmem:[#allocation5 + $0x170] sm:$0xff]
    %v132 = vld [vmem:[#allocation5 + $0x178] sm:$0xff]
    %v133 = vld [vmem:[#allocation5 + $0x180] sm:$0xff]
    %v134 = vld [vmem:[#allocation5 + $0x188] sm:$0xff]
    %v135 = vld [vmem:[#allocation5 + $0x190] sm:$0xff]
    %v136 = vld [vmem:[#allocation5 + $0x198] sm:$0xff]
    %v137 = vld [vmem:[#allocation5 + $0x1a0] sm:$0xff]
    %v138 = vld [vmem:[#allocation5 + $0x1a8] sm:$0xff]
    %v139 = vld [vmem:[#allocation5 + $0x1b0] sm:$0xff]
    %v140 = vld [vmem:[#allocation5 + $0x1b8] sm:$0xff]
    %v141 = vld [vmem:[#allocation5 + $0x1c0] sm:$0xff]
    %v142 = vld [vmem:[#allocation5 + $0x1c8] sm:$0xff]
    %v143 = vld [vmem:[#allocation5 + $0x1d0] sm:$0xff]
    %v144 = vld [vmem:[#allocation5 + $0x1d8] sm:$0xff]
    %v145 = vld [vmem:[#allocation5 + $0x1e0] sm:$0xff]
    %v146 = vld [vmem:[#allocation5 + $0x1e8] sm:$0xff]
    %v147 = vld [vmem:[#allocation5 + $0x1f0] sm:$0xff]
    %v148 = vld [vmem:[#allocation5 + $0x1f8] sm:$0xff]
    %v149 = vld [vmem:[%s2] sm:$0xf]
    %v151 = vlaneseq
    %v152 = vshrl.u32 %v151, 7
    %v153 = vsub.s32 0, %v152
    %v154 = vrot.slane %v149, %v153
    %v155 = vlaneseq
    %v156 = vshrl.u32 %v155, 7
    %v157 = vsub.s32 1, %v156
    %v158 = vrot.slane %v149, %v157
    %v159 = vlaneseq
    %v160 = vshrl.u32 %v159, 7
    %v161 = vsub.s32 2, %v160
    %v162 = vrot.slane %v149, %v161
    %v163 = vlaneseq
    %v164 = vshrl.u32 %v163, 7
    %v165 = vsub.s32 3, %v164
    %v166 = vrot.slane %v149, %v165
    %v173 = vunpack.c.l.b16 %v83
    %v174 = vunpack.c.h.b16 %v83
    %v175 = vunpack.c.l.b16 %v84
    %v176 = vunpack.c.h.b16 %v84
    %v177 = vpack.c.b16 %v175, %v173
    %v178 = vpack.c.b16 %v176, %v174
    %v245 = vunpack.c.l.b16 %v85
    %v246 = vunpack.c.h.b16 %v85
    %v247 = vunpack.c.l.b16 %v86
    %v248 = vunpack.c.h.b16 %v86
    %v249 = vunpack.c.l.b16 %v87
    %v250 = vunpack.c.h.b16 %v87
    %v251 = vunpack.c.l.b16 %v88
    %v252 = vunpack.c.h.b16 %v88
    %v253 = vunpack.c.l.b16 %v89
    %v254 = vunpack.c.h.b16 %v89
    %v255 = vunpack.c.l.b16 %v90
    %v256 = vunpack.c.h.b16 %v90
    %v257 = vunpack.c.l.b16 %v91
    %v258 = vunpack.c.h.b16 %v91
    %v259 = vunpack.c.l.b16 %v92
    %v260 = vunpack.c.h.b16 %v92
    %v261 = vunpack.c.l.b16 %v93
    %v262 = vunpack.c.h.b16 %v93
    %v263 = vunpack.c.l.b16 %v94
    %v264 = vunpack.c.h.b16 %v94
    %v265 = vunpack.c.l.b16 %v95
    %v266 = vunpack.c.h.b16 %v95
    %v267 = vunpack.c.l.b16 %v96
    %v268 = vunpack.c.h.b16 %v96
    %v269 = vunpack.c.l.b16 %v97
    %v270 = vunpack.c.h.b16 %v97
    %v271 = vunpack.c.l.b16 %v98
    %v272 = vunpack.c.h.b16 %v98
    %v273 = vunpack.c.l.b16 %v99
    %v274 = vunpack.c.h.b16 %v99
    %v275 = vunpack.c.l.b16 %v100
    %v276 = vunpack.c.h.b16 %v100
    %v277 = vunpack.c.l.b16 %v101
    %v278 = vunpack.c.h.b16 %v101
    %v279 = vunpack.c.l.b16 %v102
    %v280 = vunpack.c.h.b16 %v102
    %v281 = vunpack.c.l.b16 %v103
    %v282 = vunpack.c.h.b16 %v103
    %v283 = vunpack.c.l.b16 %v104
    %v284 = vunpack.c.h.b16 %v104
    %v285 = vunpack.c.l.b16 %v105
    %v286 = vunpack.c.h.b16 %v105
    %v287 = vunpack.c.l.b16 %v106
    %v288 = vunpack.c.h.b16 %v106
    %v289 = vunpack.c.l.b16 %v107
    %v290 = vunpack.c.h.b16 %v107
    %v291 = vunpack.c.l.b16 %v108
    %v292 = vunpack.c.h.b16 %v108
    %v293 = vunpack.c.l.b16 %v109
    %v294 = vunpack.c.h.b16 %v109
    %v295 = vunpack.c.l.b16 %v110
    %v296 = vunpack.c.h.b16 %v110
    %v297 = vunpack.c.l.b16 %v111
    %v298 = vunpack.c.h.b16 %v111
    %v299 = vunpack.c.l.b16 %v112
    %v300 = vunpack.c.h.b16 %v112
    %v301 = vunpack.c.l.b16 %v113
    %v302 = vunpack.c.h.b16 %v113
    %v303 = vunpack.c.l.b16 %v114
    %v304 = vunpack.c.h.b16 %v114
    %v305 = vunpack.c.l.b16 %v115
    %v306 = vunpack.c.h.b16 %v115
    %v307 = vunpack.c.l.b16 %v116
    %v308 = vunpack.c.h.b16 %v116
    %v309 = vunpack.c.l.b16 %v117
    %v310 = vunpack.c.h.b16 %v117
    %v311 = vunpack.c.l.b16 %v118
    %v312 = vunpack.c.h.b16 %v118
    %v313 = vunpack.c.l.b16 %v119
    %v314 = vunpack.c.h.b16 %v119
    %v315 = vunpack.c.l.b16 %v120
    %v316 = vunpack.c.h.b16 %v120
    %v317 = vunpack.c.l.b16 %v121
    %v318 = vunpack.c.h.b16 %v121
    %v319 = vunpack.c.l.b16 %v122
    %v320 = vunpack.c.h.b16 %v122
    %v321 = vunpack.c.l.b16 %v123
    %v322 = vunpack.c.h.b16 %v123
    %v323 = vunpack.c.l.b16 %v124
    %v324 = vunpack.c.h.b16 %v124
    %v325 = vunpack.c.l.b16 %v125
    %v326 = vunpack.c.h.b16 %v125
    %v327 = vunpack.c.l.b16 %v126
    %v328 = vunpack.c.h.b16 %v126
    %v329 = vunpack.c.l.b16 %v127
    %v330 = vunpack.c.h.b16 %v127
    %v331 = vunpack.c.l.b16 %v128
    %v332 = vunpack.c.h.b16 %v128
    %v333 = vunpack.c.l.b16 %v129
    %v334 = vunpack.c.h.b16 %v129
    %v335 = vunpack.c.l.b16 %v130
    %v336 = vunpack.c.h.b16 %v130
    %v337 = vunpack.c.l.b16 %v131
    %v338 = vunpack.c.h.b16 %v131
    %v339 = vunpack.c.l.b16 %v132
    %v340 = vunpack.c.h.b16 %v132
    %v341 = vunpack.c.l.b16 %v133
    %v342 = vunpack.c.h.b16 %v133
    %v343 = vunpack.c.l.b16 %v134
    %v344 = vunpack.c.h.b16 %v134
    %v345 = vunpack.c.l.b16 %v135
    %v346 = vunpack.c.h.b16 %v135
    %v347 = vunpack.c.l.b16 %v136
    %v348 = vunpack.c.h.b16 %v136
    %v349 = vunpack.c.l.b16 %v137
    %v350 = vunpack.c.h.b16 %v137
    %v351 = vunpack.c.l.b16 %v138
    %v352 = vunpack.c.h.b16 %v138
    %v353 = vunpack.c.l.b16 %v139
    %v354 = vunpack.c.h.b16 %v139
    %v355 = vunpack.c.l.b16 %v140
    %v356 = vunpack.c.h.b16 %v140
    %v357 = vunpack.c.l.b16 %v141
    %v358 = vunpack.c.h.b16 %v141
    %v359 = vunpack.c.l.b16 %v142
    %v360 = vunpack.c.h.b16 %v142
    %v361 = vunpack.c.l.b16 %v143
    %v362 = vunpack.c.h.b16 %v143
    %v363 = vunpack.c.l.b16 %v144
    %v364 = vunpack.c.h.b16 %v144
    %v365 = vunpack.c.l.b16 %v145
    %v366 = vunpack.c.h.b16 %v145
    %v367 = vunpack.c.l.b16 %v146
    %v368 = vunpack.c.h.b16 %v146
    %v369 = vunpack.c.l.b16 %v147
    %v370 = vunpack.c.h.b16 %v147
    %v371 = vunpack.c.l.b16 %v148
    %v372 = vunpack.c.h.b16 %v148
    %v373 = vpack.c.b16 %v249, %v245
    %v374 = vpack.c.b16 %v250, %v246
    %v375 = vpack.c.b16 %v251, %v247
    %v376 = vpack.c.b16 %v252, %v248
    %v377 = vpack.c.b16 %v257, %v253
    %v378 = vpack.c.b16 %v258, %v254
    %v379 = vpack.c.b16 %v259, %v255
    %v380 = vpack.c.b16 %v260, %v256
    %v381 = vpack.c.b16 %v265, %v261
    %v382 = vpack.c.b16 %v266, %v262
    %v383 = vpack.c.b16 %v267, %v263
    %v384 = vpack.c.b16 %v268, %v264
    %v385 = vpack.c.b16 %v273, %v269
    %v386 = vpack.c.b16 %v274, %v270
    %v387 = vpack.c.b16 %v275, %v271
    %v388 = vpack.c.b16 %v276, %v272
    %v389 = vpack.c.b16 %v281, %v277
    %v390 = vpack.c.b16 %v282, %v278
    %v391 = vpack.c.b16 %v283, %v279
    %v392 = vpack.c.b16 %v284, %v280
    %v393 = vpack.c.b16 %v289, %v285
    %v394 = vpack.c.b16 %v290, %v286
    %v395 = vpack.c.b16 %v291, %v287
    %v396 = vpack.c.b16 %v292, %v288
    %v397 = vpack.c.b16 %v297, %v293
    %v398 = vpack.c.b16 %v298, %v294
    %v399 = vpack.c.b16 %v299, %v295
    %v400 = vpack.c.b16 %v300, %v296
    %v401 = vpack.c.b16 %v305, %v301
    %v402 = vpack.c.b16 %v306, %v302
    %v403 = vpack.c.b16 %v307, %v303
    %v404 = vpack.c.b16 %v308, %v304
    %v405 = vpack.c.b16 %v313, %v309
    %v406 = vpack.c.b16 %v314, %v310
    %v407 = vpack.c.b16 %v315, %v311
    %v408 = vpack.c.b16 %v316, %v312
    %v409 = vpack.c.b16 %v321, %v317
    %v410 = vpack.c.b16 %v322, %v318
    %v411 = vpack.c.b16 %v323, %v319
    %v412 = vpack.c.b16 %v324, %v320
    %v413 = vpack.c.b16 %v329, %v325
    %v414 = vpack.c.b16 %v330, %v326
    %v415 = vpack.c.b16 %v331, %v327
    %v416 = vpack.c.b16 %v332, %v328
    %v417 = vpack.c.b16 %v337, %v333
    %v418 = vpack.c.b16 %v338, %v334
    %v419 = vpack.c.b16 %v339, %v335
    %v420 = vpack.c.b16 %v340, %v336
    %v421 = vpack.c.b16 %v345, %v341
    %v422 = vpack.c.b16 %v346, %v342
    %v423 = vpack.c.b16 %v347, %v343
    %v424 = vpack.c.b16 %v348, %v344
    %v425 = vpack.c.b16 %v353, %v349
    %v426 = vpack.c.b16 %v354, %v350
    %v427 = vpack.c.b16 %v355, %v351
    %v428 = vpack.c.b16 %v356, %v352
    %v429 = vpack.c.b16 %v361, %v357
    %v430 = vpack.c.b16 %v362, %v358
    %v431 = vpack.c.b16 %v363, %v359
    %v432 = vpack.c.b16 %v364, %v360
    %v433 = vpack.c.b16 %v369, %v365
    %v434 = vpack.c.b16 %v370, %v366
    %v435 = vpack.c.b16 %v371, %v367
    %v436 = vpack.c.b16 %v372, %v368
    %501 = vmatprep.subr.bf16.mxu0 %v374
    %502 = vmatpush1.bf16.msra.mxu0 %v373
    %503 = vmatprep.subr.bf16.mxu0 %v378
    %504 = vmatpush1.bf16.msra.mxu0 %v377
    %505 = vmatprep.subr.bf16.mxu0 %v382
    %506 = vmatpush1.bf16.msra.mxu0 %v381
    %507 = vmatprep.subr.bf16.mxu0 %v386
    %508 = vmatpush1.bf16.msra.mxu0 %v385
    %509 = vmatprep.subr.bf16.mxu0 %v390
    %510 = vmatpush1.bf16.msra.mxu0 %v389
    %511 = vmatprep.subr.bf16.mxu0 %v394
    %512 = vmatpush1.bf16.msra.mxu0 %v393
    %513 = vmatprep.subr.bf16.mxu0 %v398
    %514 = vmatpush1.bf16.msra.mxu0 %v397
    %515 = vmatprep.subr.bf16.mxu0 %v402
    %516 = vmatpush1.bf16.msra.mxu0 %v401
    %517 = vmatprep.subr.bf16.mxu0 %v406
    %518 = vmatpush1.bf16.msra.mxu0 %v405
    %519 = vmatprep.subr.bf16.mxu0 %v410
    %520 = vmatpush1.bf16.msra.mxu0 %v409
    %521 = vmatprep.subr.bf16.mxu0 %v414
    %522 = vmatpush1.bf16.msra.mxu0 %v413
    %523 = vmatprep.subr.bf16.mxu0 %v418
    %524 = vmatpush1.bf16.msra.mxu0 %v417
    %525 = vmatprep.subr.bf16.mxu0 %v422
    %526 = vmatpush1.bf16.msra.mxu0 %v421
    %527 = vmatprep.subr.bf16.mxu0 %v426
    %528 = vmatpush1.bf16.msra.mxu0 %v425
    %529 = vmatprep.subr.bf16.mxu0 %v430
    %530 = vmatpush1.bf16.msra.mxu0 %v429
    %531 = vmatprep.subr.bf16.mxu0 %v434
    %532 = vmatpush1.bf16.msra.mxu0 %v433
    %533 = vmatprep.mubr.bf16.mxu0 %v178
    %534 = vmatmul.mubr.bf16.gmra.mrb[0].mxu0 %v177
    %v535 = vpop.f32.mrb[0].mxu0
    %v536 = vadd.f32 %v154, %v535
    %v537 = vpop.f32.mrb[0].mxu0
    %v538 = vadd.f32 %v158, %v537
    %v539 = vpop.f32.mrb[0].mxu0
    %v540 = vadd.f32 %v154, %v539
    %v541 = vpop.f32.mrb[0].mxu0
    %v542 = vadd.f32 %v158, %v541
    %543 = vdwg.mxu0
    %544 = vmatprep.subr.bf16.mxu0 %v376
    %545 = vmatpush1.bf16.msra.mxu0 %v375
    %546 = vmatprep.subr.bf16.mxu0 %v380
    %547 = vmatpush1.bf16.msra.mxu0 %v379
    %548 = vmatprep.subr.bf16.mxu0 %v384
    %549 = vmatpush1.bf16.msra.mxu0 %v383
    %550 = vmatprep.subr.bf16.mxu0 %v388
    %551 = vmatpush1.bf16.msra.mxu0 %v387
    %552 = vmatprep.subr.bf16.mxu0 %v392
    %553 = vmatpush1.bf16.msra.mxu0 %v391
    %554 = vmatprep.subr.bf16.mxu0 %v396
    %555 = vmatpush1.bf16.msra.mxu0 %v395
    %556 = vmatprep.subr.bf16.mxu0 %v400
    %557 = vmatpush1.bf16.msra.mxu0 %v399
    %558 = vmatprep.subr.bf16.mxu0 %v404
    %559 = vmatpush1.bf16.msra.mxu0 %v403
    %560 = vmatprep.subr.bf16.mxu0 %v408
    %561 = vmatpush1.bf16.msra.mxu0 %v407
    %562 = vmatprep.subr.bf16.mxu0 %v412
    %563 = vmatpush1.bf16.msra.mxu0 %v411
    %564 = vmatprep.subr.bf16.mxu0 %v416
    %565 = vmatpush1.bf16.msra.mxu0 %v415
    %566 = vmatprep.subr.bf16.mxu0 %v420
    %567 = vmatpush1.bf16.msra.mxu0 %v419
    %568 = vmatprep.subr.bf16.mxu0 %v424
    %569 = vmatpush1.bf16.msra.mxu0 %v423
    %570 = vmatprep.subr.bf16.mxu0 %v428
    %571 = vmatpush1.bf16.msra.mxu0 %v427
    %572 = vmatprep.subr.bf16.mxu0 %v432
    %573 = vmatpush1.bf16.msra.mxu0 %v431
    %574 = vmatprep.subr.bf16.mxu0 %v436
    %575 = vmatpush1.bf16.msra.mxu0 %v435
    %576 = vmatprep.mubr.bf16.mxu0 %v178
    %577 = vmatmul.mubr.bf16.gmra.mrb[0].mxu0 %v177
    %v578 = vpop.f32.mrb[0].mxu0
    %v579 = vadd.f32 %v162, %v578
    %v580 = vpop.f32.mrb[0].mxu0
    %v581 = vadd.f32 %v166, %v580
    %v582 = vpop.f32.mrb[0].mxu0
    %v583 = vadd.f32 %v162, %v582
    %v584 = vpop.f32.mrb[0].mxu0
    %v585 = vadd.f32 %v166, %v584
    %586 = vdwg.mxu0
    %v587 = vsub.f32 0.0, %v536
    %v588 = vsub.f32 0.0, %v538
    %v589 = vsub.f32 0.0, %v579
    %v590 = vsub.f32 0.0, %v581
    %v591 = vsub.f32 0.0, %v540
    %v592 = vsub.f32 0.0, %v542
    %v593 = vsub.f32 0.0, %v583
    %v594 = vsub.f32 0.0, %v585
    %v595 = vmul.f32 %v587, 1.442695
    %v596 = vpow.pop %v595
    %v597 = vmul.f32 %v588, 1.442695
    %v598 = vpow.pop %v597
    %v599 = vmul.f32 %v589, 1.442695
    %v600 = vpow.pop %v599
    %v601 = vmul.f32 %v590, 1.442695
    %v602 = vpow.pop %v601
    %v603 = vmul.f32 %v591, 1.442695
    %v604 = vpow.pop %v603
    %v605 = vmul.f32 %v592, 1.442695
    %v606 = vpow.pop %v605
    %v607 = vmul.f32 %v593, 1.442695
    %v608 = vpow.pop %v607
    %v609 = vmul.f32 %v594, 1.442695
    %v610 = vpow.pop %v609
    %v611 = vadd.f32 %v596, 1.0
    %v612 = vadd.f32 %v598, 1.0
    %v613 = vadd.f32 %v600, 1.0
    %v614 = vadd.f32 %v602, 1.0
    %v615 = vadd.f32 %v604, 1.0
    %v616 = vadd.f32 %v606, 1.0
    %v617 = vadd.f32 %v608, 1.0
    %v618 = vadd.f32 %v610, 1.0
    %v619 = vrcp.pop %v611
    %v620 = vrcp.pop %v612
    %v621 = vrcp.pop %v613
    %v622 = vrcp.pop %v614
    %v623 = vrcp.pop %v615
    %v624 = vrcp.pop %v616
    %v625 = vrcp.pop %v617
    %v626 = vrcp.pop %v618
    %v627 = vpack.c.bf16 %v623, %v619
    %v628 = vpack.c.bf16 %v624, %v620
    %v629 = vpack.c.bf16 %v625, %v621
    %v630 = vpack.c.bf16 %v626, %v622
    %v631 = vld [vmem:[#allocation7] sm:$0xf]
    %v632 = vld [vmem:[#allocation7 + $0x4] sm:$0xf]
    %v633 = vld [vmem:[#allocation7 + $0x8] sm:$0xf]
    %v634 = vld [vmem:[#allocation7 + $0xc] sm:$0xf]
    %v635 = vld [vmem:[#allocation7 + $0x10] sm:$0xf]
    %v636 = vld [vmem:[#allocation7 + $0x14] sm:$0xf]
    %v637 = vld [vmem:[#allocation7 + $0x18] sm:$0xf]
    %v638 = vld [vmem:[#allocation7 + $0x1c] sm:$0xf]
    %v639 = vld [vmem:[#allocation7 + $0x20] sm:$0xf]
    %v640 = vld [vmem:[#allocation7 + $0x24] sm:$0xf]
    %v641 = vld [vmem:[#allocation7 + $0x28] sm:$0xf]
    %v642 = vld [vmem:[#allocation7 + $0x2c] sm:$0xf]
    %v643 = vld [vmem:[#allocation7 + $0x30] sm:$0xf]
    %v644 = vld [vmem:[#allocation7 + $0x34] sm:$0xf]
    %v645 = vld [vmem:[#allocation7 + $0x38] sm:$0xf]
    %v646 = vld [vmem:[#allocation7 + $0x3c] sm:$0xf]
    %v647 = vld [vmem:[#allocation7 + $0x40] sm:$0xf]
    %v648 = vld [vmem:[#allocation7 + $0x44] sm:$0xf]
    %v649 = vld [vmem:[#allocation7 + $0x48] sm:$0xf]
    %v650 = vld [vmem:[#allocation7 + $0x4c] sm:$0xf]
    %v651 = vld [vmem:[#allocation7 + $0x50] sm:$0xf]
    %v652 = vld [vmem:[#allocation7 + $0x54] sm:$0xf]
    %v653 = vld [vmem:[#allocation7 + $0x58] sm:$0xf]
    %v654 = vld [vmem:[#allocation7 + $0x5c] sm:$0xf]
    %v655 = vld [vmem:[#allocation7 + $0x60] sm:$0xf]
    %v656 = vld [vmem:[#allocation7 + $0x64] sm:$0xf]
    %v657 = vld [vmem:[#allocation7 + $0x68] sm:$0xf]
    %v658 = vld [vmem:[#allocation7 + $0x6c] sm:$0xf]
    %v659 = vld [vmem:[#allocation7 + $0x70] sm:$0xf]
    %v660 = vld [vmem:[#allocation7 + $0x74] sm:$0xf]
    %v661 = vld [vmem:[#allocation7 + $0x78] sm:$0xf]
    %v662 = vld [vmem:[#allocation7 + $0x7c] sm:$0xf]
    %v663 = vld [vmem:[#allocation7 + $0x80] sm:$0xf]
    %v664 = vld [vmem:[#allocation7 + $0x84] sm:$0xf]
    %v665 = vld [vmem:[#allocation7 + $0x88] sm:$0xf]
    %v666 = vld [vmem:[#allocation7 + $0x8c] sm:$0xf]
    %v667 = vld [vmem:[#allocation7 + $0x90] sm:$0xf]
    %v668 = vld [vmem:[#allocation7 + $0x94] sm:$0xf]
    %v669 = vld [vmem:[#allocation7 + $0x98] sm:$0xf]
    %v670 = vld [vmem:[#allocation7 + $0x9c] sm:$0xf]
    %v671 = vld [vmem:[#allocation7 + $0xa0] sm:$0xf]
    %v672 = vld [vmem:[#allocation7 + $0xa4] sm:$0xf]
    %v673 = vld [vmem:[#allocation7 + $0xa8] sm:$0xf]
    %v674 = vld [vmem:[#allocation7 + $0xac] sm:$0xf]
    %v675 = vld [vmem:[#allocation7 + $0xb0] sm:$0xf]
    %v676 = vld [vmem:[#allocation7 + $0xb4] sm:$0xf]
    %v677 = vld [vmem:[#allocation7 + $0xb8] sm:$0xf]
    %v678 = vld [vmem:[#allocation7 + $0xbc] sm:$0xf]
    %v679 = vld [vmem:[#allocation7 + $0xc0] sm:$0xf]
    %v680 = vld [vmem:[#allocation7 + $0xc4] sm:$0xf]
    %v681 = vld [vmem:[#allocation7 + $0xc8] sm:$0xf]
    %v682 = vld [vmem:[#allocation7 + $0xcc] sm:$0xf]
    %v683 = vld [vmem:[#allocation7 + $0xd0] sm:$0xf]
    %v684 = vld [vmem:[#allocation7 + $0xd4] sm:$0xf]
    %v685 = vld [vmem:[#allocation7 + $0xd8] sm:$0xf]
    %v686 = vld [vmem:[#allocation7 + $0xdc] sm:$0xf]
    %v687 = vld [vmem:[#allocation7 + $0xe0] sm:$0xf]
    %v688 = vld [vmem:[#allocation7 + $0xe4] sm:$0xf]
    %v689 = vld [vmem:[#allocation7 + $0xe8] sm:$0xf]
    %v690 = vld [vmem:[#allocation7 + $0xec] sm:$0xf]
    %v691 = vld [vmem:[#allocation7 + $0xf0] sm:$0xf]
    %v692 = vld [vmem:[#allocation7 + $0xf4] sm:$0xf]
    %v693 = vld [vmem:[#allocation7 + $0xf8] sm:$0xf]
    %v694 = vld [vmem:[#allocation7 + $0xfc] sm:$0xf]
    %v695 = vld [vmem:[%s4] sm:$0x1]
    %v697 = vlaneseq
    %v698 = vshrl.u32 %v697, 7
    %v699 = vsub.s32 0, %v698
    %v700 = vrot.slane %v695, %v699
    %v766 = vunpack.c.l.b16 %v631
    %v767 = vunpack.c.l.b16 %v632
    %v768 = vunpack.c.l.b16 %v633
    %v769 = vunpack.c.l.b16 %v634
    %v770 = vunpack.c.l.b16 %v635
    %v771 = vunpack.c.l.b16 %v636
    %v772 = vunpack.c.l.b16 %v637
    %v773 = vunpack.c.l.b16 %v638
    %v774 = vunpack.c.l.b16 %v639
    %v775 = vunpack.c.l.b16 %v640
    %v776 = vunpack.c.l.b16 %v641
    %v777 = vunpack.c.l.b16 %v642
    %v778 = vunpack.c.l.b16 %v643
    %v779 = vunpack.c.l.b16 %v644
    %v780 = vunpack.c.l.b16 %v645
    %v781 = vunpack.c.l.b16 %v646
    %v782 = vunpack.c.l.b16 %v647
    %v783 = vunpack.c.l.b16 %v648
    %v784 = vunpack.c.l.b16 %v649
    %v785 = vunpack.c.l.b16 %v650
    %v786 = vunpack.c.l.b16 %v651
    %v787 = vunpack.c.l.b16 %v652
    %v788 = vunpack.c.l.b16 %v653
    %v789 = vunpack.c.l.b16 %v654
    %v790 = vunpack.c.l.b16 %v655
    %v791 = vunpack.c.l.b16 %v656
    %v792 = vunpack.c.l.b16 %v657
    %v793 = vunpack.c.l.b16 %v658
    %v794 = vunpack.c.l.b16 %v659
    %v795 = vunpack.c.l.b16 %v660
    %v796 = vunpack.c.l.b16 %v661
    %v797 = vunpack.c.l.b16 %v662
    %v798 = vunpack.c.l.b16 %v663
    %v799 = vunpack.c.l.b16 %v664
    %v800 = vunpack.c.l.b16 %v665
    %v801 = vunpack.c.l.b16 %v666
    %v802 = vunpack.c.l.b16 %v667
    %v803 = vunpack.c.l.b16 %v668
    %v804 = vunpack.c.l.b16 %v669
    %v805 = vunpack.c.l.b16 %v670
    %v806 = vunpack.c.l.b16 %v671
    %v807 = vunpack.c.l.b16 %v672
    %v808 = vunpack.c.l.b16 %v673
    %v809 = vunpack.c.l.b16 %v674
    %v810 = vunpack.c.l.b16 %v675
    %v811 = vunpack.c.l.b16 %v676
    %v812 = vunpack.c.l.b16 %v677
    %v813 = vunpack.c.l.b16 %v678
    %v814 = vunpack.c.l.b16 %v679
    %v815 = vunpack.c.l.b16 %v680
    %v816 = vunpack.c.l.b16 %v681
    %v817 = vunpack.c.l.b16 %v682
    %v818 = vunpack.c.l.b16 %v683
    %v819 = vunpack.c.l.b16 %v684
    %v820 = vunpack.c.l.b16 %v685
    %v821 = vunpack.c.l.b16 %v686
    %v822 = vunpack.c.l.b16 %v687
    %v823 = vunpack.c.l.b16 %v688
    %v824 = vunpack.c.l.b16 %v689
    %v825 = vunpack.c.l.b16 %v690
    %v826 = vunpack.c.l.b16 %v691
    %v827 = vunpack.c.l.b16 %v692
    %v828 = vunpack.c.l.b16 %v693
    %v829 = vunpack.c.l.b16 %v694
    %v830 = vpack.c.b16 %v767, %v766
    %v831 = vpack.c.b16 %v769, %v768
    %v832 = vpack.c.b16 %v771, %v770
    %v833 = vpack.c.b16 %v773, %v772
    %v834 = vpack.c.b16 %v775, %v774
    %v835 = vpack.c.b16 %v777, %v776
    %v836 = vpack.c.b16 %v779, %v778
    %v837 = vpack.c.b16 %v781, %v780
    %v838 = vpack.c.b16 %v783, %v782
    %v839 = vpack.c.b16 %v785, %v784
    %v840 = vpack.c.b16 %v787, %v786
    %v841 = vpack.c.b16 %v789, %v788
    %v842 = vpack.c.b16 %v791, %v790
    %v843 = vpack.c.b16 %v793, %v792
    %v844 = vpack.c.b16 %v795, %v794
    %v845 = vpack.c.b16 %v797, %v796
    %v846 = vpack.c.b16 %v799, %v798
    %v847 = vpack.c.b16 %v801, %v800
    %v848 = vpack.c.b16 %v803, %v802
    %v849 = vpack.c.b16 %v805, %v804
    %v850 = vpack.c.b16 %v807, %v806
    %v851 = vpack.c.b16 %v809, %v808
    %v852 = vpack.c.b16 %v811, %v810
    %v853 = vpack.c.b16 %v813, %v812
    %v854 = vpack.c.b16 %v815, %v814
    %v855 = vpack.c.b16 %v817, %v816
    %v856 = vpack.c.b16 %v819, %v818
    %v857 = vpack.c.b16 %v821, %v820
    %v858 = vpack.c.b16 %v823, %v822
    %v859 = vpack.c.b16 %v825, %v824
    %v860 = vpack.c.b16 %v827, %v826
    %v861 = vpack.c.b16 %v829, %v828
    %894 = vmatprep.subr.bf16.mxu0 0
    %895 = vmatpush1.bf16.msra.mxu0 %v830
    %896 = vmatprep.subr.bf16.mxu0 0
    %897 = vmatpush1.bf16.msra.mxu0 %v831
    %898 = vmatprep.subr.bf16.mxu0 0
    %899 = vmatpush1.bf16.msra.mxu0 %v832
    %900 = vmatprep.subr.bf16.mxu0 0
    %901 = vmatpush1.bf16.msra.mxu0 %v833
    %902 = vmatprep.subr.bf16.mxu0 0
    %903 = vmatpush1.bf16.msra.mxu0 %v834
    %904 = vmatprep.subr.bf16.mxu0 0
    %905 = vmatpush1.bf16.msra.mxu0 %v835
    %906 = vmatprep.subr.bf16.mxu0 0
    %907 = vmatpush1.bf16.msra.mxu0 %v836
    %908 = vmatprep.subr.bf16.mxu0 0
    %909 = vmatpush1.bf16.msra.mxu0 %v837
    %910 = vmatprep.subr.bf16.mxu0 0
    %911 = vmatpush1.bf16.msra.mxu0 %v838
    %912 = vmatprep.subr.bf16.mxu0 0
    %913 = vmatpush1.bf16.msra.mxu0 %v839
    %914 = vmatprep.subr.bf16.mxu0 0
    %915 = vmatpush1.bf16.msra.mxu0 %v840
    %916 = vmatprep.subr.bf16.mxu0 0
    %917 = vmatpush1.bf16.msra.mxu0 %v841
    %918 = vmatprep.subr.bf16.mxu0 0
    %919 = vmatpush1.bf16.msra.mxu0 %v842
    %920 = vmatprep.subr.bf16.mxu0 0
    %921 = vmatpush1.bf16.msra.mxu0 %v843
    %922 = vmatprep.subr.bf16.mxu0 0
    %923 = vmatpush1.bf16.msra.mxu0 %v844
    %924 = vmatprep.subr.bf16.mxu0 0
    %925 = vmatpush1.bf16.msra.mxu0 %v845
    %926 = vmatprep.mubr.bf16.mxu0 %v628
    %927 = vmatmul.mubr.bf16.gmra.mrb[0].mxu0 %v627
    %v928 = vpop.f32.mrb[0].mxu0
    %v929 = vadd.f32 %v700, %v928
    %v930 = vpop.f32.mrb[0].mxu0
    %v931 = vpop.f32.mrb[0].mxu0
    %v932 = vadd.f32 %v700, %v931
    %v933 = vpop.f32.mrb[0].mxu0
    %934 = vdwg.mxu0
    %935 = vmatprep.subr.bf16.mxu0 0
    %936 = vmatpush1.bf16.msra.mxu0 %v846
    %937 = vmatprep.subr.bf16.mxu0 0
    %938 = vmatpush1.bf16.msra.mxu0 %v847
    %939 = vmatprep.subr.bf16.mxu0 0
    %940 = vmatpush1.bf16.msra.mxu0 %v848
    %941 = vmatprep.subr.bf16.mxu0 0
    %942 = vmatpush1.bf16.msra.mxu0 %v849
    %943 = vmatprep.subr.bf16.mxu0 0
    %944 = vmatpush1.bf16.msra.mxu0 %v850
    %945 = vmatprep.subr.bf16.mxu0 0
    %946 = vmatpush1.bf16.msra.mxu0 %v851
    %947 = vmatprep.subr.bf16.mxu0 0
    %948 = vmatpush1.bf16.msra.mxu0 %v852
    %949 = vmatprep.subr.bf16.mxu0 0
    %950 = vmatpush1.bf16.msra.mxu0 %v853
    %951 = vmatprep.subr.bf16.mxu0 0
    %952 = vmatpush1.bf16.msra.mxu0 %v854
    %953 = vmatprep.subr.bf16.mxu0 0
    %954 = vmatpush1.bf16.msra.mxu0 %v855
    %955 = vmatprep.subr.bf16.mxu0 0
    %956 = vmatpush1.bf16.msra.mxu0 %v856
    %957 = vmatprep.subr.bf16.mxu0 0
    %958 = vmatpush1.bf16.msra.mxu0 %v857
    %959 = vmatprep.subr.bf16.mxu0 0
    %960 = vmatpush1.bf16.msra.mxu0 %v858
    %961 = vmatprep.subr.bf16.mxu0 0
    %962 = vmatpush1.bf16.msra.mxu0 %v859
    %963 = vmatprep.subr.bf16.mxu0 0
    %964 = vmatpush1.bf16.msra.mxu0 %v860
    %965 = vmatprep.subr.bf16.mxu0 0
    %966 = vmatpush1.bf16.msra.mxu0 %v861
    %967 = vmatprep.mubr.bf16.mxu0 %v630
    %968 = vmatmul.mubr.bf16.gmra.mrb[0].mxu0 %v629
    %v969 = vpop.f32.mrb[0].mxu0
    %v970 = vadd.f32 %v929, %v969
    %v971 = vpop.f32.mrb[0].mxu0
    %v972 = vpop.f32.mrb[0].mxu0
    %v973 = vadd.f32 %v932, %v972
    %v974 = vpop.f32.mrb[0].mxu0
    %975 = vdwg.mxu0
    %v976 = vsub.f32 0.0, %v970
    %v977 = vsub.f32 0.0, %v973
    %v978 = vmul.f32 %v976, 1.442695
    %v979 = vpow.pop %v978
    %v980 = vmul.f32 %v977, 1.442695
    %v981 = vpow.pop %v980
    %v982 = vadd.f32 %v979, 1.0
    %v983 = vadd.f32 %v981, 1.0
    %v984 = vrcp.pop %v982
    %v985 = vrcp.pop %v983
    %v986 = vpack.c.bf16 %v985, %v984
    %v987 = vld [vmem:[#allocation8] sm:$0xf]
    %v988 = vld [vmem:[#allocation8 + $0x4] sm:$0xf]
    %v989 = vld [vmem:[#allocation8 + $0x8] sm:$0xf]
    %v990 = vld [vmem:[#allocation8 + $0xc] sm:$0xf]
    %v991 = vld [vmem:[#allocation8 + $0x10] sm:$0xf]
    %v992 = vld [vmem:[#allocation8 + $0x14] sm:$0xf]
    %v993 = vld [vmem:[#allocation8 + $0x18] sm:$0xf]
    %v994 = vld [vmem:[#allocation8 + $0x1c] sm:$0xf]
    %v995 = vld [vmem:[#allocation8 + $0x20] sm:$0xf]
    %v996 = vld [vmem:[#allocation8 + $0x24] sm:$0xf]
    %v997 = vld [vmem:[#allocation8 + $0x28] sm:$0xf]
    %v998 = vld [vmem:[#allocation8 + $0x2c] sm:$0xf]
    %v999 = vld [vmem:[#allocation8 + $0x30] sm:$0xf]
    %v1000 = vld [vmem:[#allocation8 + $0x34] sm:$0xf]
    %v1001 = vld [vmem:[#allocation8 + $0x38] sm:$0xf]
    %v1002 = vld [vmem:[#allocation8 + $0x3c] sm:$0xf]
    %v1003 = vld [vmem:[%s6] sm:$0x1]
    %v1005 = vlaneseq
    %v1006 = vshrl.u32 %v1005, 7
    %v1007 = vsub.s32 0, %v1006
    %v1008 = vrot.slane %v1003, %v1007
    %v1026 = vunpack.c.l.b16 %v987
    %v1027 = vunpack.c.l.b16 %v988
    %v1028 = vunpack.c.l.b16 %v989
    %v1029 = vunpack.c.l.b16 %v990
    %v1030 = vunpack.c.l.b16 %v991
    %v1031 = vunpack.c.l.b16 %v992
    %v1032 = vunpack.c.l.b16 %v993
    %v1033 = vunpack.c.l.b16 %v994
    %v1034 = vunpack.c.l.b16 %v995
    %v1035 = vunpack.c.l.b16 %v996
    %v1036 = vunpack.c.l.b16 %v997
    %v1037 = vunpack.c.l.b16 %v998
    %v1038 = vunpack.c.l.b16 %v999
    %v1039 = vunpack.c.l.b16 %v1000
    %v1040 = vunpack.c.l.b16 %v1001
    %v1041 = vunpack.c.l.b16 %v1002
    %v1042 = vpack.c.b16 %v1027, %v1026
    %v1043 = vpack.c.b16 %v1029, %v1028
    %v1044 = vpack.c.b16 %v1031, %v1030
    %v1045 = vpack.c.b16 %v1033, %v1032
    %v1046 = vpack.c.b16 %v1035, %v1034
    %v1047 = vpack.c.b16 %v1037, %v1036
    %v1048 = vpack.c.b16 %v1039, %v1038
    %v1049 = vpack.c.b16 %v1041, %v1040
    %1058 = vmatprep.subr.bf16.mxu0 0
    %1059 = vmatpush1.bf16.msra.mxu0 %v1042
    %1060 = vmatprep.subr.bf16.mxu0 0
    %1061 = vmatpush1.bf16.msra.mxu0 %v1043
    %1062 = vmatprep.subr.bf16.mxu0 0
    %1063 = vmatpush1.bf16.msra.mxu0 %v1044
    %1064 = vmatprep.subr.bf16.mxu0 0
    %1065 = vmatpush1.bf16.msra.mxu0 %v1045
    %1066 = vmatprep.subr.bf16.mxu0 0
    %1067 = vmatpush1.bf16.msra.mxu0 %v1046
    %1068 = vmatprep.subr.bf16.mxu0 0
    %1069 = vmatpush1.bf16.msra.mxu0 %v1047
    %1070 = vmatprep.subr.bf16.mxu0 0
    %1071 = vmatpush1.bf16.msra.mxu0 %v1048
    %1072 = vmatprep.subr.bf16.mxu0 0
    %1073 = vmatpush1.bf16.msra.mxu0 %v1049
    %1074 = vmatprep.subr.bf16.mxu0 0
    %1075 = vmatpush1.bf16.msra.mxu0 0
    %1076 = vmatprep.subr.bf16.mxu0 0
    %1077 = vmatpush1.bf16.msra.mxu0 0
    %1078 = vmatprep.subr.bf16.mxu0 0
    %1079 = vmatpush1.bf16.msra.mxu0 0
    %1080 = vmatprep.subr.bf16.mxu0 0
    %1081 = vmatpush1.bf16.msra.mxu0 0
    %1082 = vmatprep.subr.bf16.mxu0 0
    %1083 = vmatpush1.bf16.msra.mxu0 0
    %1084 = vmatprep.subr.bf16.mxu0 0
    %1085 = vmatpush1.bf16.msra.mxu0 0
    %1086 = vmatprep.subr.bf16.mxu0 0
    %1087 = vmatpush1.bf16.msra.mxu0 0
    %1088 = vmatprep.subr.bf16.mxu0 0
    %1089 = vmatpush1.bf16.msra.mxu0 0
    %1090 = vmatprep.mubr.bf16.mxu0 0
    %1091 = vmatmul.mubr.bf16.gmra.mrb[0].mxu0 %v986
    %v1092 = vpop.f32.mrb[0].mxu0
    %v1093 = vadd.f32 %v1008, %v1092
    %v1094 = vpop.f32.mrb[0].mxu0
    %v1095 = vpop.f32.mrb[0].mxu0
    %v1096 = vadd.f32 %v1008, %v1095
    %v1097 = vpop.f32.mrb[0].mxu0
    %1098 = vdwg.mxu0
    %1099 = vst [vmem:[#allocation10] sm:$0xff] %v1093
    %1100 = vst [vmem:[#allocation10 + $0x8] sm:$0xff] %v1096
    // Predicated region
    $region46: #{tpu_custom_call.1} parent=1 // pred_check
      _
    $region47: #{tpu_custom_call.1} parent=1 // pred_check_branch
      %1102 = sbr.rel (0) target = $region49
    $region48: #{tpu_custom_call.1} parent=1 // pred_region
      %s1104 = ssub.s32 256, 256
      %1105 = vsyncadd [#allocation4], %s1104
      %s1106 = sshll.u32 [#allocation10], 4
      %s1107 = int_to_ptr.vmem [resolvable:$true] %s1106
      %1112 = dma.vmem_to_hbm [thread:$0]  %s1107, 256, %s7, [#allocation4], 128, 128, 8
    $region49: #{tpu_custom_call.1} parent=1 // pred_fallthru
      _
    // Predicated region
    $region50: #{tpu_custom_call.1} parent=1 // pred_check
      _
    $region51: #{tpu_custom_call.1} parent=1 // pred_check_branch
      %1114 = sbr.rel (0) target = $region53
    $region52: #{tpu_custom_call.1} parent=1 // pred_region
      %1115 = dma.done [#allocation4], 256
    $region53: #{tpu_custom_call.1} parent=1 // pred_fallthru
      _
    %1116 = vsyncpa [#allocation3], 1
    %1117 = vsyncpa [#allocation6], 1
    %1118 = vsyncpa [#allocation9], 1
    %1119 = vsyncpa [#allocation4], 1

</llo_original>
